<compile_context>
chip_gen: v5e
topology: v5e:2x2
jax: 0.10.0
libtpu: 0.0.40
codegen_flags: <defaults>
</compile_context>

<pallas_src>
import functools

import jax
import jax.numpy as jnp
from jax.experimental import pallas as pl
from jax.experimental.pallas import tpu as pltpu

IN_FEATURES = 784
OUT_FEATURES = 10
OUT_PAD = 128  # pad logits lane dim to a full vreg lane width


def _round_up(x, m):
    return ((x + m - 1) // m) * m


def _default_config():
    """Pick (tile_b, vmem_limit_bytes) by TPU generation (VMEM capacity)."""
    try:
        vmem_bytes = pltpu.get_tpu_info().vmem_capacity_bytes
    except Exception:
        vmem_bytes = 64 << 20  # conservative (v7x-sized) fallback
    if vmem_bytes >= (100 << 20):
        # v5e / v6e: 128 MiB VMEM.  f32 x tiles: 2 x 12288*784*4B ~= 73 MiB,
        # plus 2 x 6 MiB f32 out tiles -> ~86 MiB under a 96 MiB limit.
        return 12288, 96 << 20
    # v7x: 64 MiB VMEM per TC.  2 x 6144*784*4B ~= 37 MiB + 2 x 3 MiB out.
    return 6144, 48 << 20


def linear_kernel(x_ref, w_ref, b_ref, o_ref):
    # Cast the f32 x tile to bf16 on the VPU (free; DMA is the binding
    # resource), one (TB, 784) @ (784, 128) MXU matmul per grid step with f32
    # accumulation, f32 bias add, lane-dense (TB, 128) f32 store.
    x_bf = x_ref[...].astype(jnp.bfloat16)
    acc = jnp.dot(x_bf, w_ref[...], preferred_element_type=jnp.float32)
    o_ref[...] = acc + b_ref[...]


@functools.partial(jax.jit, static_argnames=("tile_b", "vmem_limit"))
def _forward(x, w, b, *, tile_b, vmem_limit):
    B = x.shape[0]

    # Tiny-batch guard: keep every block's sublane dim a multiple of 8.
    B_eff = B
    if B_eff < 8:
        x = jnp.pad(x, ((0, 8 - B_eff), (0, 0)))
        B_eff = 8

    # ---- host-side layout prep for the *small* operands only ---------------
    # W: (10, 784) -> transposed, lane-padded to (784, 128), bf16 (tiny: 200 KB).
    w_t_pad = jnp.zeros((IN_FEATURES, OUT_PAD), jnp.bfloat16)
    w_t_pad = w_t_pad.at[:, :OUT_FEATURES].set(w.T.astype(jnp.bfloat16))
    # bias kept in f32 for the f32 epilogue add.
    b_pad = jnp.zeros((1, OUT_PAD), jnp.float32)
    b_pad = b_pad.at[:, :OUT_FEATURES].set(b)

    # ---- batch tiling -------------------------------------------------------
    # Multiple of 8, never larger than the (>=8) batch, and split into at
    # least 2 blocks when possible so both v7x TensorCores get work.
    TB = min(_round_up(tile_b, 8), B_eff)
    TB = max(8, (TB // 8) * 8)
    TB = max(8, min(TB, _round_up(pl.cdiv(B_eff, 2), 8)))
    grid = (pl.cdiv(B_eff, TB),)  # partial last block allowed; no jnp.pad copy

    cost = pl.CostEstimate(
        flops=2 * B_eff * IN_FEATURES * OUT_PAD,
        transcendentals=0,
        bytes_accessed=(B_eff * IN_FEATURES * 4          # x (f32, read once)
                        + IN_FEATURES * OUT_PAD * 2      # W (bf16, resident)
                        + OUT_PAD * 4                    # bias (f32)
                        + B_eff * OUT_PAD * 4),          # out (f32)
    )

    out_pad = pl.pallas_call(
        linear_kernel,
        out_shape=jax.ShapeDtypeStruct((B_eff, OUT_PAD), jnp.float32),
        grid_spec=pltpu.PrefetchScalarGridSpec(
            num_scalar_prefetch=0,
            grid=grid,
            in_specs=[
                # x: tiled over the batch -> pipelined, double-buffered DMAs.
                pl.BlockSpec((TB, IN_FEATURES), lambda i: (i, 0)),
                # W, b: same block every step -> loaded once, VMEM-resident.
                pl.BlockSpec((IN_FEATURES, OUT_PAD), lambda i: (0, 0)),
                pl.BlockSpec((1, OUT_PAD), lambda i: (0, 0)),
            ],
            out_specs=pl.BlockSpec((TB, OUT_PAD), lambda i: (i, 0)),
        ),
        compiler_params=pltpu.CompilerParams(
            dimension_semantics=("parallel",),   # independent batch tiles
            vmem_limit_bytes=vmem_limit,
        ),
        cost_estimate=cost,
    )(x, w_t_pad, b_pad)

    # Drop the 118 padded output lanes (and tiny-batch padding if any).
    # Output stays f32 to preserve nn.Linear logits semantics.
    return out_pad[:B, :OUT_FEATURES]


def mnist_logistic_forward(x, w, b, *, tile_b=None, vmem_limit=None):
    """Forward pass of Mnist_Logistic.

    x: (B, 784) f32 batch, w: (10, 784) f32 (PyTorch nn.Linear layout),
    b: (10,) f32.  Returns (B, 10) f32 logits.
    """
    if tile_b is None or vmem_limit is None:
        d_tile, d_vmem = _default_config()
        tile_b = d_tile if tile_b is None else tile_b
        vmem_limit = d_vmem if vmem_limit is None else vmem_limit
    return _forward(x, w, b, tile_b=int(tile_b), vmem_limit=int(vmem_limit))


if __name__ == "__main__":
    key = jax.random.PRNGKey(0)
    kx, kw, kb = jax.random.split(key, 3)

    # Deterministic parameters matching nn.Linear(784, 10) layout: W (out, in).
    bound = 1.0 / (IN_FEATURES ** 0.5)
    w = jax.random.uniform(kw, (OUT_FEATURES, IN_FEATURES), jnp.float32, -bound, bound)
    b = jax.random.uniform(kb, (OUT_FEATURES,), jnp.float32, -bound, bound)

    # B deliberately NOT a multiple of the tile: exercises the partial-block
    # (pl.cdiv) path with no batch padding.
    B = 500
    x = jax.random.normal(kx, (B, IN_FEATURES), jnp.float32)

    # Small-tile path (grid of 4 with a partial last block).
    out_small = mnist_logistic_forward(x, w, b, tile_b=128)
    out_small = jax.block_until_ready(out_small)
    # Default (generation-gated) tile path.
    out = mnist_logistic_forward(x, w, b)
    out = jax.block_until_ready(out)
    assert out.shape == (B, OUT_FEATURES)
    assert out_small.shape == (B, OUT_FEATURES)
    assert jnp.allclose(out, out_small, atol=1e-5, rtol=1e-5)

    # Reference 1: same bf16-rounded inputs, f32 math (tight check of kernel math).
    x_r = x.astype(jnp.bfloat16).astype(jnp.float32)
    w_r = w.astype(jnp.bfloat16).astype(jnp.float32)
    ref_bf16 = jnp.dot(x_r, w_r.T, precision=jax.lax.Precision.HIGHEST) + b
    assert jnp.allclose(out, ref_bf16, atol=1e-3, rtol=1e-3)

    # Reference 2: full-precision nn.Linear semantics (loose check, bf16 matmul inputs).
    ref_f32 = x @ w.T + b
    assert jnp.allclose(out, ref_f32, atol=3e-2, rtol=3e-2)

    print("KERNEL_OK")
</pallas_src>

<mosaic_0001>
module attributes {stable_mosaic.version = 11 : i64} {
  func.func @linear_kernel(%arg0: i32, %arg1: memref<128x784xf32, #tpu.memory_space<vmem>>, %arg2: memref<784x128xbf16, #tpu.memory_space<vmem>>, %arg3: memref<1x128xf32, #tpu.memory_space<vmem>>, %arg4: memref<128x128xf32, #tpu.memory_space<vmem>>) attributes {dimension_semantics = [#tpu.dimension_semantics<parallel>], iteration_bounds = array<i64: 4>, scalar_prefetch = 0 : i64, scratch_operands = 0 : i64, tpu.core_type = #tpu.core_type<tc>, window_params = [{transform_indices = @transform_0, window_bounds = array<i64: 128, 784>}, {pipeline_mode = #tpu.pipeline_mode<synchronous>, transform_indices = @transform_1, window_bounds = array<i64: 784, 128>}, {pipeline_mode = #tpu.pipeline_mode<synchronous>, transform_indices = @transform_2, window_bounds = array<i64: 1, 128>}, {transform_indices = @transform_3, window_bounds = array<i64: 128, 128>}]} {
    %c0 = arith.constant 0 : index
    %c0_0 = arith.constant 0 : index
    %0 = vector.load %arg1[%c0, %c0_0] : memref<128x784xf32, #tpu.memory_space<vmem>>, vector<128x784xf32>
    %1 = arith.truncf %0 : vector<128x784xf32> to vector<128x784xbf16>
    %c0_1 = arith.constant 0 : index
    %c0_2 = arith.constant 0 : index
    %2 = vector.load %arg2[%c0_1, %c0_2] : memref<784x128xbf16, #tpu.memory_space<vmem>>, vector<784x128xbf16>
    %cst = arith.constant dense<0.000000e+00> : vector<128x128xf32>
    %3 = tpu.matmul %1, %2, %cst {dimension_numbers = #tpu.dot_dimension_numbers<[1], [0], [0], [1], [0, 0, 1, 1], [], []>} : vector<128x784xbf16>, vector<784x128xbf16>, vector<128x128xf32> -> vector<128x128xf32>
    %c0_3 = arith.constant 0 : index
    %c0_4 = arith.constant 0 : index
    %4 = vector.load %arg3[%c0_3, %c0_4] : memref<1x128xf32, #tpu.memory_space<vmem>>, vector<1x128xf32>
    %5 = vector.broadcast %4 : vector<1x128xf32> to vector<128x128xf32>
    %6 = arith.addf %3, %5 : vector<128x128xf32>
    %c0_5 = arith.constant 0 : index
    %c0_6 = arith.constant 0 : index
    %7 = vector.load %arg4[%c0_5, %c0_6] : memref<128x128xf32, #tpu.memory_space<vmem>>, vector<128x128xf32>
    tpu.vector_store %arg4[%c0_5, %c0_6], %6 {strides = array<i32>} : memref<128x128xf32, #tpu.memory_space<vmem>>, vector<128x128xf32>,
    return
  }
  func.func @transform_0(%arg0: i32) -> (i32, i32) {
    %c0_i32 = arith.constant 0 : i32
    %c0_i32_0 = arith.constant 0 : i32
    return %arg0, %c0_i32 : i32, i32
  }
  func.func @transform_1(%arg0: i32) -> (i32, i32) {
    %c0_i32 = arith.constant 0 : i32
    %c0_i32_0 = arith.constant 0 : i32
    %c0_i32_1 = arith.constant 0 : i32
    return %c0_i32, %c0_i32_0 : i32, i32
  }
  func.func @transform_2(%arg0: i32) -> (i32, i32) {
    %c0_i32 = arith.constant 0 : i32
    %c0_i32_0 = arith.constant 0 : i32
    %c0_i32_1 = arith.constant 0 : i32
    return %c0_i32, %c0_i32_0 : i32, i32
  }
  func.func @transform_3(%arg0: i32) -> (i32, i32) {
    %c0_i32 = arith.constant 0 : i32
    %c0_i32_0 = arith.constant 0 : i32
    return %arg0, %c0_i32 : i32, i32
  }
}

</mosaic_0001>

<llo_original>
// kernel: _forward.1
$region0: #{_forward.1}
  #allocation0 [shape = 'u32[]', space=smem, size = 0x4, offset = 0x4, fixed_abs, tag = 'smem constant byte address 0x4 - core index']
  #allocation1 [shape = 'u32[72,128]{1,0:T(1,128)}', space=vmem, size = 0x9000, scoped, tag = 'internal scratch']
  %s0 = inlined_call_operand.vmem [shape: f32[500,784], index: 0, kind: input, shape index: {}]
  %s1 = inlined_call_operand.vmem [shape: bf16[784,128], index: 1, kind: input, shape index: {}]
  %s2 = inlined_call_operand.vmem [shape: f32[1,128], index: 2, kind: input, shape index: {}]
  %s3 = inlined_call_operand.vmem [shape: f32[500,128], index: 3, kind: output, shape index: {}]
  %s4 = sld [smem:[#allocation0]]
  $region93: #{_forward.1} parent=0
    _
  %s6 = ssub.s32 1, %s4
  %s7 = scalar_select 0, %s6, %s4
  $region1: #{_forward.1} parent=0
    #allocation2 [shape = 'u8[131072]{0}', space=vmem, size = 0x20000, scoped, tag = 'output window, operand 0']
    loop: start=0, step=1, limit=6
    $region2: #{_forward.1} parent=1 // loop_pre_header
      _
    $region3: #{_forward.1} parent=1 // loop_header
      %s9 = sphi 0, %s13
      %p10 = scmp.ge.s32.totalorder %s9, 6
      %s19 = sphi 0, %s21
      %s22 = sphi 0, %s19
      %s23 = sphi 0, %s22
      %s39 = sphi 0, %s23
      %s43 = sphi 0, %s43
      %s45 = sphi 0, %s43
      %s46 = sphi 0, %s45
      %s60 = sphi 0, %s46
      %s64 = sphi 0, %s64
      %s66 = sphi 0, %s64
      %s67 = sphi 0, %s66
      %s81 = sphi 0, %s67
      %s87 = sphi 0, %s89
      %s90 = sphi 0, %s87
      %s91 = sphi 0, %s90
      %s107 = sphi 0, %s91
    $region4: #{_forward.1} parent=1 // loop_header_branch
      %12 = sbr.rel (%p10) target = $region8
    $region5: #{_forward.1} parent=1 // loop_body
      %s14 = ssub.s32 %s9, 1
      %s15 = ssub.s32 %s9, 2
      %s16 = sadd.s32 %s9, 1
      %s17 = ssub.s32 %s9, %s16
      %p18 = scmp.eq.s32.totalorder %s17, 0
      %s20 = sadd.s32 %s19, 1
      %s21 = scalar_select %p18, %s19, %s20
      %p24 = pneg %p18
      %p25 = scmp.eq.s32.totalorder %s9, 3
      %p26 = por %p24, %p25
      %p27 = scmp.ne.s32.totalorder %s19, %s22
      %p28 = scmp.eq.s32.totalorder %s9, 0
      %p29 = por %p27, %p28
      %p30 = scmp.ne.s32.totalorder %s19, %s22
      %p31 = scmp.eq.s32.totalorder %s14, 3
      %p32 = por %p30, %p31
      %p33 = scmp.ne.s32.totalorder %s22, %s23
      %p34 = scmp.eq.s32.totalorder %s14, 0
      %p35 = por %p33, %p34
      %p36 = scmp.ne.s32.totalorder %s22, %s23
      %p37 = scmp.eq.s32.totalorder %s15, 3
      %p38 = por %p36, %p37
      %p40 = scmp.ne.s32.totalorder %s23, %s39
      %p41 = scmp.eq.s32.totalorder %s15, 0
      %p42 = por %p40, %p41
      %s44 = sadd.s32 %s43, 1
      %p47 = scmp.eq.s32.totalorder %s9, 3
      %p48 = scmp.ne.s32.totalorder %s43, %s45
      %p49 = scmp.eq.s32.totalorder %s9, 0
      %p50 = por %p48, %p49
      %p51 = scmp.ne.s32.totalorder %s43, %s45
      %p52 = scmp.eq.s32.totalorder %s14, 3
      %p53 = por %p51, %p52
      %p54 = scmp.ne.s32.totalorder %s45, %s46
      %p55 = scmp.eq.s32.totalorder %s14, 0
      %p56 = por %p54, %p55
      %p57 = scmp.ne.s32.totalorder %s45, %s46
      %p58 = scmp.eq.s32.totalorder %s15, 3
      %p59 = por %p57, %p58
      %p61 = scmp.ne.s32.totalorder %s46, %s60
      %p62 = scmp.eq.s32.totalorder %s15, 0
      %p63 = por %p61, %p62
      %s65 = sadd.s32 %s64, 1
      %p68 = scmp.eq.s32.totalorder %s9, 3
      %p69 = scmp.ne.s32.totalorder %s64, %s66
      %p70 = scmp.eq.s32.totalorder %s9, 0
      %p71 = por %p69, %p70
      %p72 = scmp.ne.s32.totalorder %s64, %s66
      %p73 = scmp.eq.s32.totalorder %s14, 3
      %p74 = por %p72, %p73
      %p75 = scmp.ne.s32.totalorder %s66, %s67
      %p76 = scmp.eq.s32.totalorder %s14, 0
      %p77 = por %p75, %p76
      %p78 = scmp.ne.s32.totalorder %s66, %s67
      %p79 = scmp.eq.s32.totalorder %s15, 3
      %p80 = por %p78, %p79
      %p82 = scmp.ne.s32.totalorder %s67, %s81
      %p83 = scmp.eq.s32.totalorder %s15, 0
      %p84 = por %p82, %p83
      %s85 = ssub.s32 %s9, %s16
      %p86 = scmp.eq.s32.totalorder %s85, 0
      %s88 = sadd.s32 %s87, 1
      %s89 = scalar_select %p86, %s87, %s88
      %p92 = pneg %p86
      %p93 = scmp.eq.s32.totalorder %s9, 3
      %p94 = por %p92, %p93
      %p95 = scmp.ne.s32.totalorder %s87, %s90
      %p96 = scmp.eq.s32.totalorder %s9, 0
      %p97 = por %p95, %p96
      %p98 = scmp.ne.s32.totalorder %s87, %s90
      %p99 = scmp.eq.s32.totalorder %s14, 3
      %p100 = por %p98, %p99
      %p101 = scmp.ne.s32.totalorder %s90, %s91
      %p102 = scmp.eq.s32.totalorder %s14, 0
      %p103 = por %p101, %p102
      %p104 = scmp.ne.s32.totalorder %s90, %s91
      %p105 = scmp.eq.s32.totalorder %s15, 3
      %p106 = por %p104, %p105
      %p108 = scmp.ne.s32.totalorder %s91, %s107
      %p109 = scmp.eq.s32.totalorder %s15, 0
      %p110 = por %p108, %p109
      %p111 = scmp.le.s32.totalorder 1, %s9
      %p112 = scmp.lt.s32.totalorder %s9, 5
      %p113 = pnand %p111, %p112
      %p114 = pneg %p113
      // Predicated region
      $region9: #{_forward.1} parent=5 // pred_check
        _
      $region10: #{_forward.1} parent=5 // pred_check_branch
        %116 = sbr.rel (%p113) target = $region12
      $region11: #{_forward.1} parent=5 // pred_region
        %s117 = ssub.s32 %s9, 1
        // Predicated region
        $region13: #{_forward.1} parent=11 // pred_check
          %p118 = pneg %p56
        $region14: #{_forward.1} parent=11 // pred_check_branch
          %120 = sbr.rel (%p118) target = $region16
        $region15: #{_forward.1} parent=11 // pred_region
          _
        $region16: #{_forward.1} parent=11 // pred_fallthru
          _
        // Predicated region
        $region17: #{_forward.1} parent=11 // pred_check
          %p121 = pneg %p77
        $region18: #{_forward.1} parent=11 // pred_check_branch
          %123 = sbr.rel (%p121) target = $region20
        $region19: #{_forward.1} parent=11 // pred_region
          _
        $region20: #{_forward.1} parent=11 // pred_fallthru
          _
      $region12: #{_forward.1} parent=5 // pred_fallthru
        _
      %p124 = scmp.lt.s32.totalorder %s9, 4
      // Predicated region
      $region21: #{_forward.1} parent=5 // pred_check
        %p125 = pneg %p124
      $region22: #{_forward.1} parent=5 // pred_check_branch
        %127 = sbr.rel (%p125) target = $region24
      $region23: #{_forward.1} parent=5 // pred_region
        // Predicated region
        $region25: #{_forward.1} parent=23 // pred_check
          %p128 = pneg %p29
        $region26: #{_forward.1} parent=23 // pred_check_branch
          %130 = sbr.rel (%p128) target = $region28
        $region27: #{_forward.1} parent=23 // pred_region
          %s131 = smul.u32 16, %s9
          %s132 = ssub.s32 63, %s131
          %p133 = scmp.lt.s32.totalorder %s132, 16
          %s134 = scalar_select %p133, %s132, 16
          %s135 = smul.u32 8, %s134
          %s136 = smul.u32 %s135, 7
          %p137 = scmp.lt.s32.totalorder %s131, 62
          %s138 = scalar_select %p137, %s131, 62
          %s139 = smul.addr %s138, 7
          %s140 = smul.addr %s139, 8
          %s141 = scalar_lea.vmem %s0, %s140
          %s142 = smul.u32 16, %s9
          %s143 = ssub.s32 63, %s142
          %p144 = scmp.lt.s32.totalorder %s143, 16
          %s145 = scalar_select %p144, %s143, 16
          %s146 = smul.u32 8, %s145
          %s147 = smul.u32 %s146, 7
        $region28: #{_forward.1} parent=23 // pred_fallthru
          _
      $region24: #{_forward.1} parent=5 // pred_fallthru
        _
      %p148 = scmp.le.s32.totalorder 1, %s9
      %p149 = scmp.lt.s32.totalorder %s9, 5
      %p150 = pnand %p148, %p149
      %p151 = pneg %p150
      // Predicated region
      $region29: #{_forward.1} parent=5 // pred_check
        _
      $region30: #{_forward.1} parent=5 // pred_check_branch
        %153 = sbr.rel (%p150) target = $region32
      $region31: #{_forward.1} parent=5 // pred_region
        %s154 = ssub.s32 %s9, 1
        %s155 = smul.u32 16, %s14
        %s156 = ssub.s32 63, %s155
        %p157 = scmp.lt.s32.totalorder %s156, 16
        %s158 = scalar_select %p157, %s156, 16
        %s159 = smul.u32 8, %s158
        %s160 = smul.u32 %s159, 7
        %p161 = scmp.lt.s32.totalorder %s155, 62
        %s162 = scalar_select %p161, %s155, 62
        %s163 = smul.addr %s162, 7
        %s164 = smul.addr %s163, 8
        %s165 = scalar_lea.vmem %s0, %s164
        %p166 = pneg %p35
        %p167 = pneg %p32
        %p168 = pneg %p56
        %p169 = pneg %p53
        %p170 = pneg %p77
        %p171 = pneg %p74
        %p172 = pneg %p103
        %p173 = pneg %p100
        %s174 = sand.u32 %s90, 1
        %s175 = sand.u32 %s90, 1
        %s176 = smul.addr %s175, 128
        %s177 = scalar_lea.vmem [#allocation2], %s176
        %s178 = smul.u32 16, %s14
        %s179 = ssub.s32 63, %s178
        %p180 = scmp.lt.s32.totalorder %s179, 16
        %s181 = scalar_select %p180, %s179, 16
        %s182 = smul.u32 8, %s181
        %s183 = smul.u32 %s182, 7
        %p184 = scmp.lt.s32.totalorder %s178, 62
        %s185 = scalar_select %p184, %s178, 62
        %s186 = smul.addr %s185, 7
        %s187 = smul.addr %s186, 8
        %s188 = scalar_lea.vmem %s0, %s187
        %s189 = smul.u32 16, %s14
        %s190 = ssub.s32 63, %s189
        %p191 = scmp.lt.s32.totalorder %s190, 16
        %s192 = scalar_select %p191, %s190, 16
        %s193 = smul.u32 8, %s192
        %s194 = smul.u32 %s193, 7
        %s195 = smul.u32 16, %s14
        %s196 = ssub.s32 63, %s195
        %p197 = scmp.lt.s32.totalorder %s196, 16
        %s198 = scalar_select %p197, %s196, 16
        %s199 = smul.u32 8, %s198
        %v201 = vld [vmem:[%s188] sm:$0xff]
        %v202 = vld [vmem:[%s188 + $0x8] sm:$0xff]
        %v203 = vld [vmem:[%s188 + $0x10] sm:$0xff]
        %v204 = vld [vmem:[%s188 + $0x18] sm:$0xff]
        %v205 = vld [vmem:[%s188 + $0x20] sm:$0xff]
        %v206 = vld [vmem:[%s188 + $0x28] sm:$0xff]
        %v207 = vld [vmem:[%s188 + $0x30] sm:$0xff]
        %v208 = vld [vmem:[%s188 + $0x38] sm:$0xff]
        %v209 = vld [vmem:[%s188 + $0x40] sm:$0xff]
        %v210 = vld [vmem:[%s188 + $0x48] sm:$0xff]
        %v211 = vld [vmem:[%s188 + $0x50] sm:$0xff]
        %v212 = vld [vmem:[%s188 + $0x58] sm:$0xff]
        %v213 = vld [vmem:[%s188 + $0x60] sm:$0xff]
        %v214 = vld [vmem:[%s188 + $0x68] sm:$0xff]
        %v215 = vld [vmem:[%s188 + $0x70] sm:$0xff]
        %v216 = vld [vmem:[%s188 + $0x78] sm:$0xff]
        %v217 = vld [vmem:[%s188 + $0x80] sm:$0xff]
        %v218 = vld [vmem:[%s188 + $0x88] sm:$0xff]
        %v219 = vld [vmem:[%s188 + $0x90] sm:$0xff]
        %v220 = vld [vmem:[%s188 + $0x98] sm:$0xff]
        %v221 = vld [vmem:[%s188 + $0xa0] sm:$0xff]
        %v222 = vld [vmem:[%s188 + $0xa8] sm:$0xff]
        %v223 = vld [vmem:[%s188 + $0xb0] sm:$0xff]
        %v224 = vld [vmem:[%s188 + $0xb8] sm:$0xff]
        %v225 = vld [vmem:[%s188 + $0xc0] sm:$0xff]
        %v226 = vld [vmem:[%s188 + $0xc8] sm:$0xff]
        %v227 = vld [vmem:[%s188 + $0xd0] sm:$0xff]
        %v228 = vld [vmem:[%s188 + $0xd8] sm:$0xff]
        %v229 = vld [vmem:[%s188 + $0xe0] sm:$0xff]
        %v230 = vld [vmem:[%s188 + $0xe8] sm:$0xff]
        %v231 = vld [vmem:[%s188 + $0xf0] sm:$0xff]
        %v232 = vld [vmem:[%s188 + $0xf8] sm:$0xff]
        %v233 = vld [vmem:[%s188 + $0x100] sm:$0xff]
        %v234 = vld [vmem:[%s188 + $0x108] sm:$0xff]
        %v235 = vld [vmem:[%s188 + $0x110] sm:$0xff]
        %v236 = vld [vmem:[%s188 + $0x118] sm:$0xff]
        %v237 = vld [vmem:[%s188 + $0x120] sm:$0xff]
        %v238 = vld [vmem:[%s188 + $0x128] sm:$0xff]
        %v239 = vld [vmem:[%s188 + $0x130] sm:$0xff]
        %v240 = vld [vmem:[%s188 + $0x138] sm:$0xff]
        %v241 = vld [vmem:[%s188 + $0x140] sm:$0xff]
        %v242 = vld [vmem:[%s188 + $0x148] sm:$0xff]
        %v243 = vld [vmem:[%s188 + $0x150] sm:$0xff]
        %v244 = vld [vmem:[%s188 + $0x158] sm:$0xff]
        %v245 = vld [vmem:[%s188 + $0x160] sm:$0xff]
        %v246 = vld [vmem:[%s188 + $0x168] sm:$0xff]
        %v247 = vld [vmem:[%s188 + $0x170] sm:$0xff]
        %v248 = vld [vmem:[%s188 + $0x178] sm:$0xff]
        %v249 = vld [vmem:[%s188 + $0x180] sm:$0xff]
        %v250 = vld [vmem:[%s188 + $0x188] sm:$0xff]
        %v251 = vld [vmem:[%s188 + $0x190] sm:$0xff]
        %v252 = vld [vmem:[%s188 + $0x198] sm:$0xff]
        %v253 = vld [vmem:[%s188 + $0x1a0] sm:$0xff]
        %v254 = vld [vmem:[%s188 + $0x1a8] sm:$0xff]
        %v255 = vld [vmem:[%s188 + $0x1b0] sm:$0xff]
        %v256 = vld [vmem:[%s188 + $0x1b8] sm:$0xff]
        %v257 = vld [vmem:[%s188 + $0x1c0] sm:$0xff]
        %v258 = vld [vmem:[%s188 + $0x1c8] sm:$0xff]
        %v259 = vld [vmem:[%s188 + $0x1d0] sm:$0xff]
        %v260 = vld [vmem:[%s188 + $0x1d8] sm:$0xff]
        %v261 = vld [vmem:[%s188 + $0x1e0] sm:$0xff]
        %v262 = vld [vmem:[%s188 + $0x1e8] sm:$0xff]
        %v263 = vld [vmem:[%s188 + $0x1f0] sm:$0xff]
        %v264 = vld [vmem:[%s188 + $0x1f8] sm:$0xff]
        %v265 = vld [vmem:[%s188 + $0x200] sm:$0xff]
        %v266 = vld [vmem:[%s188 + $0x208] sm:$0xff]
        %v267 = vld [vmem:[%s188 + $0x210] sm:$0xff]
        %v268 = vld [vmem:[%s188 + $0x218] sm:$0xff]
        %v269 = vld [vmem:[%s188 + $0x220] sm:$0xff]
        %v270 = vld [vmem:[%s188 + $0x228] sm:$0xff]
        %v271 = vld [vmem:[%s188 + $0x230] sm:$0xff]
        %v272 = vld [vmem:[%s188 + $0x238] sm:$0xff]
        %v273 = vld [vmem:[%s188 + $0x240] sm:$0xff]
        %v274 = vld [vmem:[%s188 + $0x248] sm:$0xff]
        %v275 = vld [vmem:[%s188 + $0x250] sm:$0xff]
        %v276 = vld [vmem:[%s188 + $0x258] sm:$0xff]
        %v277 = vld [vmem:[%s188 + $0x260] sm:$0xff]
        %v278 = vld [vmem:[%s188 + $0x268] sm:$0xff]
        %v279 = vld [vmem:[%s188 + $0x270] sm:$0xff]
        %v280 = vld [vmem:[%s188 + $0x278] sm:$0xff]
        %v281 = vld [vmem:[%s188 + $0x280] sm:$0xff]
        %v282 = vld [vmem:[%s188 + $0x288] sm:$0xff]
        %v283 = vld [vmem:[%s188 + $0x290] sm:$0xff]
        %v284 = vld [vmem:[%s188 + $0x298] sm:$0xff]
        %v285 = vld [vmem:[%s188 + $0x2a0] sm:$0xff]
        %v286 = vld [vmem:[%s188 + $0x2a8] sm:$0xff]
        %v287 = vld [vmem:[%s188 + $0x2b0] sm:$0xff]
        %v288 = vld [vmem:[%s188 + $0x2b8] sm:$0xff]
        %v289 = vld [vmem:[%s188 + $0x2c0] sm:$0xff]
        %v290 = vld [vmem:[%s188 + $0x2c8] sm:$0xff]
        %v291 = vld [vmem:[%s188 + $0x2d0] sm:$0xff]
        %v292 = vld [vmem:[%s188 + $0x2d8] sm:$0xff]
        %v293 = vld [vmem:[%s188 + $0x2e0] sm:$0xff]
        %v294 = vld [vmem:[%s188 + $0x2e8] sm:$0xff]
        %v295 = vld [vmem:[%s188 + $0x2f0] sm:$0xff]
        %v296 = vld [vmem:[%s188 + $0x2f8] sm:$0xff]
        %v297 = vld [vmem:[%s188 + $0x300] sm:$0xff]
        %v298 = vld [vmem:[%s188 + $0x308] sm:$0xff]
        %v299 = vld [vmem:[%s188 + $0x310] sm:$0xff]
        %v300 = vld [vmem:[%s188 + $0x318] sm:$0xff]
        %v301 = vld [vmem:[%s188 + $0x320] sm:$0xff]
        %v302 = vld [vmem:[%s188 + $0x328] sm:$0xff]
        %v303 = vld [vmem:[%s188 + $0x330] sm:$0xff]
        %v304 = vld [vmem:[%s188 + $0x338] sm:$0xff]
        %v305 = vld [vmem:[%s188 + $0x340] sm:$0xff]
        %v306 = vld [vmem:[%s188 + $0x348] sm:$0xff]
        %v307 = vld [vmem:[%s188 + $0x350] sm:$0xff]
        %v308 = vld [vmem:[%s188 + $0x358] sm:$0xff]
        %v309 = vld [vmem:[%s188 + $0x360] sm:$0xff]
        %v310 = vld [vmem:[%s188 + $0x368] sm:$0xff]
        %v311 = vld [vmem:[%s188 + $0x370] sm:$0xff]
        %v312 = vld [vmem:[%s188 + $0x378] sm:$0xff]
        %v313 = vpack.c.bf16 %v208, %v201
        %v314 = vpack.c.bf16 %v209, %v202
        %v315 = vpack.c.bf16 %v210, %v203
        %v316 = vpack.c.bf16 %v211, %v204
        %v317 = vpack.c.bf16 %v212, %v205
        %v318 = vpack.c.bf16 %v213, %v206
        %v319 = vpack.c.bf16 %v214, %v207
        %v320 = vpack.c.bf16 %v222, %v215
        %v321 = vpack.c.bf16 %v223, %v216
        %v322 = vpack.c.bf16 %v224, %v217
        %v323 = vpack.c.bf16 %v225, %v218
        %v324 = vpack.c.bf16 %v226, %v219
        %v325 = vpack.c.bf16 %v227, %v220
        %v326 = vpack.c.bf16 %v228, %v221
        %v327 = vpack.c.bf16 %v236, %v229
        %v328 = vpack.c.bf16 %v237, %v230
        %v329 = vpack.c.bf16 %v238, %v231
        %v330 = vpack.c.bf16 %v239, %v232
        %v331 = vpack.c.bf16 %v240, %v233
        %v332 = vpack.c.bf16 %v241, %v234
        %v333 = vpack.c.bf16 %v242, %v235
        %v334 = vpack.c.bf16 %v250, %v243
        %v335 = vpack.c.bf16 %v251, %v244
        %v336 = vpack.c.bf16 %v252, %v245
        %v337 = vpack.c.bf16 %v253, %v246
        %v338 = vpack.c.bf16 %v254, %v247
        %v339 = vpack.c.bf16 %v255, %v248
        %v340 = vpack.c.bf16 %v256, %v249
        %v341 = vpack.c.bf16 %v264, %v257
        %v342 = vpack.c.bf16 %v265, %v258
        %v343 = vpack.c.bf16 %v266, %v259
        %v344 = vpack.c.bf16 %v267, %v260
        %v345 = vpack.c.bf16 %v268, %v261
        %v346 = vpack.c.bf16 %v269, %v262
        %v347 = vpack.c.bf16 %v270, %v263
        %v348 = vpack.c.bf16 %v278, %v271
        %v349 = vpack.c.bf16 %v279, %v272
        %v350 = vpack.c.bf16 %v280, %v273
        %v351 = vpack.c.bf16 %v281, %v274
        %v352 = vpack.c.bf16 %v282, %v275
        %v353 = vpack.c.bf16 %v283, %v276
        %v354 = vpack.c.bf16 %v284, %v277
        %v355 = vpack.c.bf16 %v292, %v285
        %v356 = vpack.c.bf16 %v293, %v286
        %v357 = vpack.c.bf16 %v294, %v287
        %v358 = vpack.c.bf16 %v295, %v288
        %v359 = vpack.c.bf16 %v296, %v289
        %v360 = vpack.c.bf16 %v297, %v290
        %v361 = vpack.c.bf16 %v298, %v291
        %v362 = vpack.c.bf16 %v306, %v299
        %v363 = vpack.c.bf16 %v307, %v300
        %v364 = vpack.c.bf16 %v308, %v301
        %v365 = vpack.c.bf16 %v309, %v302
        %v366 = vpack.c.bf16 %v310, %v303
        %v367 = vpack.c.bf16 %v311, %v304
        %v368 = vpack.c.bf16 %v312, %v305
        %v369 = vld [vmem:[%s1] sm:$0xf]
        %v370 = vld [vmem:[%s1 + $0x4] sm:$0xf]
        %v371 = vld [vmem:[%s1 + $0x8] sm:$0xf]
        %v372 = vld [vmem:[%s1 + $0xc] sm:$0xf]
        %v373 = vld [vmem:[%s1 + $0x10] sm:$0xf]
        %v374 = vld [vmem:[%s1 + $0x14] sm:$0xf]
        %v375 = vld [vmem:[%s1 + $0x18] sm:$0xf]
        %v376 = vld [vmem:[%s1 + $0x1c] sm:$0xf]
        %v377 = vld [vmem:[%s1 + $0x20] sm:$0xf]
        %v378 = vld [vmem:[%s1 + $0x24] sm:$0xf]
        %v379 = vld [vmem:[%s1 + $0x28] sm:$0xf]
        %v380 = vld [vmem:[%s1 + $0x2c] sm:$0xf]
        %v381 = vld [vmem:[%s1 + $0x30] sm:$0xf]
        %v382 = vld [vmem:[%s1 + $0x34] sm:$0xf]
        %v383 = vld [vmem:[%s1 + $0x38] sm:$0xf]
        %v384 = vld [vmem:[%s1 + $0x3c] sm:$0xf]
        %v385 = vld [vmem:[%s1 + $0x40] sm:$0xf]
        %v386 = vld [vmem:[%s1 + $0x44] sm:$0xf]
        %v387 = vld [vmem:[%s1 + $0x48] sm:$0xf]
        %v388 = vld [vmem:[%s1 + $0x4c] sm:$0xf]
        %v389 = vld [vmem:[%s1 + $0x50] sm:$0xf]
        %v390 = vld [vmem:[%s1 + $0x54] sm:$0xf]
        %v391 = vld [vmem:[%s1 + $0x58] sm:$0xf]
        %v392 = vld [vmem:[%s1 + $0x5c] sm:$0xf]
        %v393 = vld [vmem:[%s1 + $0x60] sm:$0xf]
        %v394 = vld [vmem:[%s1 + $0x64] sm:$0xf]
        %v395 = vld [vmem:[%s1 + $0x68] sm:$0xf]
        %v396 = vld [vmem:[%s1 + $0x6c] sm:$0xf]
        %v397 = vld [vmem:[%s1 + $0x70] sm:$0xf]
        %v398 = vld [vmem:[%s1 + $0x74] sm:$0xf]
        %v399 = vld [vmem:[%s1 + $0x78] sm:$0xf]
        %v400 = vld [vmem:[%s1 + $0x7c] sm:$0xf]
        %v401 = vld [vmem:[%s1 + $0x80] sm:$0xf]
        %v402 = vld [vmem:[%s1 + $0x84] sm:$0xf]
        %v403 = vld [vmem:[%s1 + $0x88] sm:$0xf]
        %v404 = vld [vmem:[%s1 + $0x8c] sm:$0xf]
        %v405 = vld [vmem:[%s1 + $0x90] sm:$0xf]
        %v406 = vld [vmem:[%s1 + $0x94] sm:$0xf]
        %v407 = vld [vmem:[%s1 + $0x98] sm:$0xf]
        %v408 = vld [vmem:[%s1 + $0x9c] sm:$0xf]
        %v409 = vld [vmem:[%s1 + $0xa0] sm:$0xf]
        %v410 = vld [vmem:[%s1 + $0xa4] sm:$0xf]
        %v411 = vld [vmem:[%s1 + $0xa8] sm:$0xf]
        %v412 = vld [vmem:[%s1 + $0xac] sm:$0xf]
        %v413 = vld [vmem:[%s1 + $0xb0] sm:$0xf]
        %v414 = vld [vmem:[%s1 + $0xb4] sm:$0xf]
        %v415 = vld [vmem:[%s1 + $0xb8] sm:$0xf]
        %v416 = vld [vmem:[%s1 + $0xbc] sm:$0xf]
        %v417 = vld [vmem:[%s1 + $0xc0] sm:$0xf]
        %v418 = vld [vmem:[%s1 + $0xc4] sm:$0xf]
        %v419 = vld [vmem:[%s1 + $0xc8] sm:$0xf]
        %v420 = vld [vmem:[%s1 + $0xcc] sm:$0xf]
        %v421 = vld [vmem:[%s1 + $0xd0] sm:$0xf]
        %v422 = vld [vmem:[%s1 + $0xd4] sm:$0xf]
        %v423 = vld [vmem:[%s1 + $0xd8] sm:$0xf]
        %v424 = vld [vmem:[%s1 + $0xdc] sm:$0xf]
        %v425 = vld [vmem:[%s1 + $0xe0] sm:$0xf]
        %v426 = vld [vmem:[%s1 + $0xe4] sm:$0xf]
        %v427 = vld [vmem:[%s1 + $0xe8] sm:$0xf]
        %v428 = vld [vmem:[%s1 + $0xec] sm:$0xf]
        %v429 = vld [vmem:[%s1 + $0xf0] sm:$0xf]
        %v430 = vld [vmem:[%s1 + $0xf4] sm:$0xf]
        %v431 = vld [vmem:[%s1 + $0xf8] sm:$0xf]
        %v432 = vld [vmem:[%s1 + $0xfc] sm:$0xf]
        %v433 = vld [vmem:[%s1 + $0x100] sm:$0xf]
        %v434 = vld [vmem:[%s1 + $0x104] sm:$0xf]
        %v435 = vld [vmem:[%s1 + $0x108] sm:$0xf]
        %v436 = vld [vmem:[%s1 + $0x10c] sm:$0xf]
        %v437 = vld [vmem:[%s1 + $0x110] sm:$0xf]
        %v438 = vld [vmem:[%s1 + $0x114] sm:$0xf]
        %v439 = vld [vmem:[%s1 + $0x118] sm:$0xf]
        %v440 = vld [vmem:[%s1 + $0x11c] sm:$0xf]
        %v441 = vld [vmem:[%s1 + $0x120] sm:$0xf]
        %v442 = vld [vmem:[%s1 + $0x124] sm:$0xf]
        %v443 = vld [vmem:[%s1 + $0x128] sm:$0xf]
        %v444 = vld [vmem:[%s1 + $0x12c] sm:$0xf]
        %v445 = vld [vmem:[%s1 + $0x130] sm:$0xf]
        %v446 = vld [vmem:[%s1 + $0x134] sm:$0xf]
        %v447 = vld [vmem:[%s1 + $0x138] sm:$0xf]
        %v448 = vld [vmem:[%s1 + $0x13c] sm:$0xf]
        %v449 = vld [vmem:[%s1 + $0x140] sm:$0xf]
        %v450 = vld [vmem:[%s1 + $0x144] sm:$0xf]
        %v451 = vld [vmem:[%s1 + $0x148] sm:$0xf]
        %v452 = vld [vmem:[%s1 + $0x14c] sm:$0xf]
        %v453 = vld [vmem:[%s1 + $0x150] sm:$0xf]
        %v454 = vld [vmem:[%s1 + $0x154] sm:$0xf]
        %v455 = vld [vmem:[%s1 + $0x158] sm:$0xf]
        %v456 = vld [vmem:[%s1 + $0x15c] sm:$0xf]
        %v457 = vld [vmem:[%s1 + $0x160] sm:$0xf]
        %v458 = vld [vmem:[%s1 + $0x164] sm:$0xf]
        %v459 = vld [vmem:[%s1 + $0x168] sm:$0xf]
        %v460 = vld [vmem:[%s1 + $0x16c] sm:$0xf]
        %v461 = vld [vmem:[%s1 + $0x170] sm:$0xf]
        %v462 = vld [vmem:[%s1 + $0x174] sm:$0xf]
        %v463 = vld [vmem:[%s1 + $0x178] sm:$0xf]
        %v464 = vld [vmem:[%s1 + $0x17c] sm:$0xf]
        %v465 = vld [vmem:[%s1 + $0x180] sm:$0xf]
        %v466 = vld [vmem:[%s1 + $0x184] sm:$0xf]
        %v467 = vld [vmem:[%s2] sm:$0x1]
        %v469 = vperm.slane %v467, 0
        %v569 = vunpack.c.l.b16 %v369
        %v570 = vunpack.c.l.b16 %v370
        %v571 = vunpack.c.l.b16 %v371
        %v572 = vunpack.c.l.b16 %v372
        %v573 = vunpack.c.l.b16 %v373
        %v574 = vunpack.c.l.b16 %v374
        %v575 = vunpack.c.l.b16 %v375
        %v576 = vunpack.c.l.b16 %v376
        %v577 = vunpack.c.l.b16 %v377
        %v578 = vunpack.c.l.b16 %v378
        %v579 = vunpack.c.l.b16 %v379
        %v580 = vunpack.c.l.b16 %v380
        %v581 = vunpack.c.l.b16 %v381
        %v582 = vunpack.c.l.b16 %v382
        %v583 = vunpack.c.l.b16 %v383
        %v584 = vunpack.c.l.b16 %v384
        %v585 = vunpack.c.l.b16 %v385
        %v586 = vunpack.c.l.b16 %v386
        %v587 = vunpack.c.l.b16 %v387
        %v588 = vunpack.c.l.b16 %v388
        %v589 = vunpack.c.l.b16 %v389
        %v590 = vunpack.c.l.b16 %v390
        %v591 = vunpack.c.l.b16 %v391
        %v592 = vunpack.c.l.b16 %v392
        %v593 = vunpack.c.l.b16 %v393
        %v594 = vunpack.c.l.b16 %v394
        %v595 = vunpack.c.l.b16 %v395
        %v596 = vunpack.c.l.b16 %v396
        %v597 = vunpack.c.l.b16 %v397
        %v598 = vunpack.c.l.b16 %v398
        %v599 = vunpack.c.l.b16 %v399
        %v600 = vunpack.c.l.b16 %v400
        %v601 = vunpack.c.l.b16 %v401
        %v602 = vunpack.c.l.b16 %v402
        %v603 = vunpack.c.l.b16 %v403
        %v604 = vunpack.c.l.b16 %v404
        %v605 = vunpack.c.l.b16 %v405
        %v606 = vunpack.c.l.b16 %v406
        %v607 = vunpack.c.l.b16 %v407
        %v608 = vunpack.c.l.b16 %v408
        %v609 = vunpack.c.l.b16 %v409
        %v610 = vunpack.c.l.b16 %v410
        %v611 = vunpack.c.l.b16 %v411
        %v612 = vunpack.c.l.b16 %v412
        %v613 = vunpack.c.l.b16 %v413
        %v614 = vunpack.c.l.b16 %v414
        %v615 = vunpack.c.l.b16 %v415
        %v616 = vunpack.c.l.b16 %v416
        %v617 = vunpack.c.l.b16 %v417
        %v618 = vunpack.c.l.b16 %v418
        %v619 = vunpack.c.l.b16 %v419
        %v620 = vunpack.c.l.b16 %v420
        %v621 = vunpack.c.l.b16 %v421
        %v622 = vunpack.c.l.b16 %v422
        %v623 = vunpack.c.l.b16 %v423
        %v624 = vunpack.c.l.b16 %v424
        %v625 = vunpack.c.l.b16 %v425
        %v626 = vunpack.c.l.b16 %v426
        %v627 = vunpack.c.l.b16 %v427
        %v628 = vunpack.c.l.b16 %v428
        %v629 = vunpack.c.l.b16 %v429
        %v630 = vunpack.c.l.b16 %v430
        %v631 = vunpack.c.l.b16 %v431
        %v632 = vunpack.c.l.b16 %v432
        %v633 = vunpack.c.l.b16 %v433
        %v634 = vunpack.c.l.b16 %v434
        %v635 = vunpack.c.l.b16 %v435
        %v636 = vunpack.c.l.b16 %v436
        %v637 = vunpack.c.l.b16 %v437
        %v638 = vunpack.c.l.b16 %v438
        %v639 = vunpack.c.l.b16 %v439
        %v640 = vunpack.c.l.b16 %v440
        %v641 = vunpack.c.l.b16 %v441
        %v642 = vunpack.c.l.b16 %v442
        %v643 = vunpack.c.l.b16 %v443
        %v644 = vunpack.c.l.b16 %v444
        %v645 = vunpack.c.l.b16 %v445
        %v646 = vunpack.c.l.b16 %v446
        %v647 = vunpack.c.l.b16 %v447
        %v648 = vunpack.c.l.b16 %v448
        %v649 = vunpack.c.l.b16 %v449
        %v650 = vunpack.c.l.b16 %v450
        %v651 = vunpack.c.l.b16 %v451
        %v652 = vunpack.c.l.b16 %v452
        %v653 = vunpack.c.l.b16 %v453
        %v654 = vunpack.c.l.b16 %v454
        %v655 = vunpack.c.l.b16 %v455
        %v656 = vunpack.c.l.b16 %v456
        %v657 = vunpack.c.l.b16 %v457
        %v658 = vunpack.c.l.b16 %v458
        %v659 = vunpack.c.l.b16 %v459
        %v660 = vunpack.c.l.b16 %v460
        %v661 = vunpack.c.l.b16 %v461
        %v662 = vunpack.c.l.b16 %v462
        %v663 = vunpack.c.l.b16 %v463
        %v664 = vunpack.c.l.b16 %v464
        %v665 = vunpack.c.l.b16 %v465
        %v666 = vunpack.c.l.b16 %v466
        %v667 = vpack.c.b16 %v570, %v569
        %v668 = vpack.c.b16 %v572, %v571
        %v669 = vpack.c.b16 %v574, %v573
        %v670 = vpack.c.b16 %v576, %v575
        %v671 = vpack.c.b16 %v578, %v577
        %v672 = vpack.c.b16 %v580, %v579
        %v673 = vpack.c.b16 %v582, %v581
        %v674 = vpack.c.b16 %v584, %v583
        %v675 = vpack.c.b16 %v586, %v585
        %v676 = vpack.c.b16 %v588, %v587
        %v677 = vpack.c.b16 %v590, %v589
        %v678 = vpack.c.b16 %v592, %v591
        %v679 = vpack.c.b16 %v594, %v593
        %v680 = vpack.c.b16 %v596, %v595
        %v681 = vpack.c.b16 %v598, %v597
        %v682 = vpack.c.b16 %v600, %v599
        %v683 = vpack.c.b16 %v602, %v601
        %v684 = vpack.c.b16 %v604, %v603
        %v685 = vpack.c.b16 %v606, %v605
        %v686 = vpack.c.b16 %v608, %v607
        %v687 = vpack.c.b16 %v610, %v609
        %v688 = vpack.c.b16 %v612, %v611
        %v689 = vpack.c.b16 %v614, %v613
        %v690 = vpack.c.b16 %v616, %v615
        %v691 = vpack.c.b16 %v618, %v617
        %v692 = vpack.c.b16 %v620, %v619
        %v693 = vpack.c.b16 %v622, %v621
        %v694 = vpack.c.b16 %v624, %v623
        %v695 = vpack.c.b16 %v626, %v625
        %v696 = vpack.c.b16 %v628, %v627
        %v697 = vpack.c.b16 %v630, %v629
        %v698 = vpack.c.b16 %v632, %v631
        %v699 = vpack.c.b16 %v634, %v633
        %v700 = vpack.c.b16 %v636, %v635
        %v701 = vpack.c.b16 %v638, %v637
        %v702 = vpack.c.b16 %v640, %v639
        %v703 = vpack.c.b16 %v642, %v641
        %v704 = vpack.c.b16 %v644, %v643
        %v705 = vpack.c.b16 %v646, %v645
        %v706 = vpack.c.b16 %v648, %v647
        %v707 = vpack.c.b16 %v650, %v649
        %v708 = vpack.c.b16 %v652, %v651
        %v709 = vpack.c.b16 %v654, %v653
        %v710 = vpack.c.b16 %v656, %v655
        %v711 = vpack.c.b16 %v658, %v657
        %v712 = vpack.c.b16 %v660, %v659
        %v713 = vpack.c.b16 %v662, %v661
        %v714 = vpack.c.b16 %v664, %v663
        %v715 = vpack.c.b16 %v666, %v665
        %vm765 = vcmask 130048
        %v767 = vsel %vm765, %v319, 0
        %v770 = vsel %vm765, %v326, 0
        %v773 = vsel %vm765, %v333, 0
        %v776 = vsel %vm765, %v340, 0
        %v779 = vsel %vm765, %v347, 0
        %v782 = vsel %vm765, %v354, 0
        %v785 = vsel %vm765, %v361, 0
        %v788 = vsel %vm765, %v368, 0
        %790 = vmatpush.bf16.msra.mxu0 %v674
        %791 = vmatpush.bf16.msra.mxu0 %v673
        %792 = vmatpush.bf16.msra.mxu0 %v672
        %793 = vmatpush.bf16.msra.mxu0 %v671
        %794 = vmatpush.bf16.msra.mxu0 %v670
        %795 = vmatpush.bf16.msra.mxu0 %v669
        %796 = vmatpush.bf16.msra.mxu0 %v668
        %797 = vmatpush.bf16.msra.mxu0 %v667
        %798 = vmatmul.bf16.gmra.mxu0 %v313
        %v799 = vpop.f32.mrf.mxu0
        %v800 = vadd.f32 %v469, %v799
        %v801 = vpop.f32.mrf.mxu0
        %v802 = vadd.f32 %v469, %v801
        %803 = vmatmul.bf16.gmra.mxu0 %v320
        %v804 = vpop.f32.mrf.mxu0
        %v805 = vadd.f32 %v469, %v804
        %v806 = vpop.f32.mrf.mxu0
        %v807 = vadd.f32 %v469, %v806
        %808 = vmatmul.bf16.gmra.mxu0 %v327
        %v809 = vpop.f32.mrf.mxu0
        %v810 = vadd.f32 %v469, %v809
        %v811 = vpop.f32.mrf.mxu0
        %v812 = vadd.f32 %v469, %v811
        %813 = vmatmul.bf16.gmra.mxu0 %v334
        %v814 = vpop.f32.mrf.mxu0
        %v815 = vadd.f32 %v469, %v814
        %v816 = vpop.f32.mrf.mxu0
        %v817 = vadd.f32 %v469, %v816
        %818 = vmatmul.bf16.gmra.mxu0 %v341
        %v819 = vpop.f32.mrf.mxu0
        %v820 = vadd.f32 %v469, %v819
        %v821 = vpop.f32.mrf.mxu0
        %v822 = vadd.f32 %v469, %v821
        %823 = vmatmul.bf16.gmra.mxu0 %v348
        %v824 = vpop.f32.mrf.mxu0
        %v825 = vadd.f32 %v469, %v824
        %v826 = vpop.f32.mrf.mxu0
        %v827 = vadd.f32 %v469, %v826
        %828 = vmatmul.bf16.gmra.mxu0 %v355
        %v829 = vpop.f32.mrf.mxu0
        %v830 = vadd.f32 %v469, %v829
        %v831 = vpop.f32.mrf.mxu0
        %v832 = vadd.f32 %v469, %v831
        %833 = vmatmul.bf16.gmra.mxu0 %v362
        %v834 = vpop.f32.mrf.mxu0
        %v835 = vadd.f32 %v469, %v834
        %v836 = vpop.f32.mrf.mxu0
        %v837 = vadd.f32 %v469, %v836
        %838 = vdwg.mxu0
        %839 = vmatpush.bf16.msra.mxu0 %v682
        %840 = vmatpush.bf16.msra.mxu0 %v681
        %841 = vmatpush.bf16.msra.mxu0 %v680
        %842 = vmatpush.bf16.msra.mxu0 %v679
        %843 = vmatpush.bf16.msra.mxu0 %v678
        %844 = vmatpush.bf16.msra.mxu0 %v677
        %845 = vmatpush.bf16.msra.mxu0 %v676
        %846 = vmatpush.bf16.msra.mxu0 %v675
        %847 = vmatmul.bf16.gmra.mxu0 %v314
        %v848 = vpop.f32.mrf.mxu0
        %v849 = vadd.f32 %v800, %v848
        %v850 = vpop.f32.mrf.mxu0
        %v851 = vadd.f32 %v802, %v850
        %852 = vmatmul.bf16.gmra.mxu0 %v321
        %v853 = vpop.f32.mrf.mxu0
        %v854 = vadd.f32 %v805, %v853
        %v855 = vpop.f32.mrf.mxu0
        %v856 = vadd.f32 %v807, %v855
        %857 = vmatmul.bf16.gmra.mxu0 %v328
        %v858 = vpop.f32.mrf.mxu0
        %v859 = vadd.f32 %v810, %v858
        %v860 = vpop.f32.mrf.mxu0
        %v861 = vadd.f32 %v812, %v860
        %862 = vmatmul.bf16.gmra.mxu0 %v335
        %v863 = vpop.f32.mrf.mxu0
        %v864 = vadd.f32 %v815, %v863
        %v865 = vpop.f32.mrf.mxu0
        %v866 = vadd.f32 %v817, %v865
        %867 = vmatmul.bf16.gmra.mxu0 %v342
        %v868 = vpop.f32.mrf.mxu0
        %v869 = vadd.f32 %v820, %v868
        %v870 = vpop.f32.mrf.mxu0
        %v871 = vadd.f32 %v822, %v870
        %872 = vmatmul.bf16.gmra.mxu0 %v349
        %v873 = vpop.f32.mrf.mxu0
        %v874 = vadd.f32 %v825, %v873
        %v875 = vpop.f32.mrf.mxu0
        %v876 = vadd.f32 %v827, %v875
        %877 = vmatmul.bf16.gmra.mxu0 %v356
        %v878 = vpop.f32.mrf.mxu0
        %v879 = vadd.f32 %v830, %v878
        %v880 = vpop.f32.mrf.mxu0
        %v881 = vadd.f32 %v832, %v880
        %882 = vmatmul.bf16.gmra.mxu0 %v363
        %v883 = vpop.f32.mrf.mxu0
        %v884 = vadd.f32 %v835, %v883
        %v885 = vpop.f32.mrf.mxu0
        %v886 = vadd.f32 %v837, %v885
        %887 = vdwg.mxu0
        %888 = vmatpush.bf16.msra.mxu0 %v690
        %889 = vmatpush.bf16.msra.mxu0 %v689
        %890 = vmatpush.bf16.msra.mxu0 %v688
        %891 = vmatpush.bf16.msra.mxu0 %v687
        %892 = vmatpush.bf16.msra.mxu0 %v686
        %893 = vmatpush.bf16.msra.mxu0 %v685
        %894 = vmatpush.bf16.msra.mxu0 %v684
        %895 = vmatpush.bf16.msra.mxu0 %v683
        %896 = vmatmul.bf16.gmra.mxu0 %v315
        %v897 = vpop.f32.mrf.mxu0
        %v898 = vadd.f32 %v849, %v897
        %v899 = vpop.f32.mrf.mxu0
        %v900 = vadd.f32 %v851, %v899
        %901 = vmatmul.bf16.gmra.mxu0 %v322
        %v902 = vpop.f32.mrf.mxu0
        %v903 = vadd.f32 %v854, %v902
        %v904 = vpop.f32.mrf.mxu0
        %v905 = vadd.f32 %v856, %v904
        %906 = vmatmul.bf16.gmra.mxu0 %v329
        %v907 = vpop.f32.mrf.mxu0
        %v908 = vadd.f32 %v859, %v907
        %v909 = vpop.f32.mrf.mxu0
        %v910 = vadd.f32 %v861, %v909
        %911 = vmatmul.bf16.gmra.mxu0 %v336
        %v912 = vpop.f32.mrf.mxu0
        %v913 = vadd.f32 %v864, %v912
        %v914 = vpop.f32.mrf.mxu0
        %v915 = vadd.f32 %v866, %v914
        %916 = vmatmul.bf16.gmra.mxu0 %v343
        %v917 = vpop.f32.mrf.mxu0
        %v918 = vadd.f32 %v869, %v917
        %v919 = vpop.f32.mrf.mxu0
        %v920 = vadd.f32 %v871, %v919
        %921 = vmatmul.bf16.gmra.mxu0 %v350
        %v922 = vpop.f32.mrf.mxu0
        %v923 = vadd.f32 %v874, %v922
        %v924 = vpop.f32.mrf.mxu0
        %v925 = vadd.f32 %v876, %v924
        %926 = vmatmul.bf16.gmra.mxu0 %v357
        %v927 = vpop.f32.mrf.mxu0
        %v928 = vadd.f32 %v879, %v927
        %v929 = vpop.f32.mrf.mxu0
        %v930 = vadd.f32 %v881, %v929
        %931 = vmatmul.bf16.gmra.mxu0 %v364
        %v932 = vpop.f32.mrf.mxu0
        %v933 = vadd.f32 %v884, %v932
        %v934 = vpop.f32.mrf.mxu0
        %v935 = vadd.f32 %v886, %v934
        %936 = vdwg.mxu0
        %937 = vmatpush.bf16.msra.mxu0 %v698
        %938 = vmatpush.bf16.msra.mxu0 %v697
        %939 = vmatpush.bf16.msra.mxu0 %v696
        %940 = vmatpush.bf16.msra.mxu0 %v695
        %941 = vmatpush.bf16.msra.mxu0 %v694
        %942 = vmatpush.bf16.msra.mxu0 %v693
        %943 = vmatpush.bf16.msra.mxu0 %v692
        %944 = vmatpush.bf16.msra.mxu0 %v691
        %945 = vmatmul.bf16.gmra.mxu0 %v316
        %v946 = vpop.f32.mrf.mxu0
        %v947 = vadd.f32 %v898, %v946
        %v948 = vpop.f32.mrf.mxu0
        %v949 = vadd.f32 %v900, %v948
        %950 = vmatmul.bf16.gmra.mxu0 %v323
        %v951 = vpop.f32.mrf.mxu0
        %v952 = vadd.f32 %v903, %v951
        %v953 = vpop.f32.mrf.mxu0
        %v954 = vadd.f32 %v905, %v953
        %955 = vmatmul.bf16.gmra.mxu0 %v330
        %v956 = vpop.f32.mrf.mxu0
        %v957 = vadd.f32 %v908, %v956
        %v958 = vpop.f32.mrf.mxu0
        %v959 = vadd.f32 %v910, %v958
        %960 = vmatmul.bf16.gmra.mxu0 %v337
        %v961 = vpop.f32.mrf.mxu0
        %v962 = vadd.f32 %v913, %v961
        %v963 = vpop.f32.mrf.mxu0
        %v964 = vadd.f32 %v915, %v963
        %965 = vmatmul.bf16.gmra.mxu0 %v344
        %v966 = vpop.f32.mrf.mxu0
        %v967 = vadd.f32 %v918, %v966
        %v968 = vpop.f32.mrf.mxu0
        %v969 = vadd.f32 %v920, %v968
        %970 = vmatmul.bf16.gmra.mxu0 %v351
        %v971 = vpop.f32.mrf.mxu0
        %v972 = vadd.f32 %v923, %v971
        %v973 = vpop.f32.mrf.mxu0
        %v974 = vadd.f32 %v925, %v973
        %975 = vmatmul.bf16.gmra.mxu0 %v358
        %v976 = vpop.f32.mrf.mxu0
        %v977 = vadd.f32 %v928, %v976
        %v978 = vpop.f32.mrf.mxu0
        %v979 = vadd.f32 %v930, %v978
        %980 = vmatmul.bf16.gmra.mxu0 %v365
        %v981 = vpop.f32.mrf.mxu0
        %v982 = vadd.f32 %v933, %v981
        %v983 = vpop.f32.mrf.mxu0
        %v984 = vadd.f32 %v935, %v983
        %985 = vdwg.mxu0
        %986 = vmatpush.bf16.msra.mxu0 %v706
        %987 = vmatpush.bf16.msra.mxu0 %v705
        %988 = vmatpush.bf16.msra.mxu0 %v704
        %989 = vmatpush.bf16.msra.mxu0 %v703
        %990 = vmatpush.bf16.msra.mxu0 %v702
        %991 = vmatpush.bf16.msra.mxu0 %v701
        %992 = vmatpush.bf16.msra.mxu0 %v700
        %993 = vmatpush.bf16.msra.mxu0 %v699
        %994 = vmatmul.bf16.gmra.mxu0 %v317
        %v995 = vpop.f32.mrf.mxu0
        %v996 = vadd.f32 %v947, %v995
        %v997 = vpop.f32.mrf.mxu0
        %v998 = vadd.f32 %v949, %v997
        %999 = vmatmul.bf16.gmra.mxu0 %v324
        %v1000 = vpop.f32.mrf.mxu0
        %v1001 = vadd.f32 %v952, %v1000
        %v1002 = vpop.f32.mrf.mxu0
        %v1003 = vadd.f32 %v954, %v1002
        %1004 = vmatmul.bf16.gmra.mxu0 %v331
        %v1005 = vpop.f32.mrf.mxu0
        %v1006 = vadd.f32 %v957, %v1005
        %v1007 = vpop.f32.mrf.mxu0
        %v1008 = vadd.f32 %v959, %v1007
        %1009 = vmatmul.bf16.gmra.mxu0 %v338
        %v1010 = vpop.f32.mrf.mxu0
        %v1011 = vadd.f32 %v962, %v1010
        %v1012 = vpop.f32.mrf.mxu0
        %v1013 = vadd.f32 %v964, %v1012
        %1014 = vmatmul.bf16.gmra.mxu0 %v345
        %v1015 = vpop.f32.mrf.mxu0
        %v1016 = vadd.f32 %v967, %v1015
        %v1017 = vpop.f32.mrf.mxu0
        %v1018 = vadd.f32 %v969, %v1017
        %1019 = vmatmul.bf16.gmra.mxu0 %v352
        %v1020 = vpop.f32.mrf.mxu0
        %v1021 = vadd.f32 %v972, %v1020
        %v1022 = vpop.f32.mrf.mxu0
        %v1023 = vadd.f32 %v974, %v1022
        %1024 = vmatmul.bf16.gmra.mxu0 %v359
        %v1025 = vpop.f32.mrf.mxu0
        %v1026 = vadd.f32 %v977, %v1025
        %v1027 = vpop.f32.mrf.mxu0
        %v1028 = vadd.f32 %v979, %v1027
        %1029 = vmatmul.bf16.gmra.mxu0 %v366
        %v1030 = vpop.f32.mrf.mxu0
        %v1031 = vadd.f32 %v982, %v1030
        %v1032 = vpop.f32.mrf.mxu0
        %v1033 = vadd.f32 %v984, %v1032
        %1034 = vdwg.mxu0
        %1035 = vmatpush.bf16.msra.mxu0 %v714
        %1036 = vmatpush.bf16.msra.mxu0 %v713
        %1037 = vmatpush.bf16.msra.mxu0 %v712
        %1038 = vmatpush.bf16.msra.mxu0 %v711
        %1039 = vmatpush.bf16.msra.mxu0 %v710
        %1040 = vmatpush.bf16.msra.mxu0 %v709
        %1041 = vmatpush.bf16.msra.mxu0 %v708
        %1042 = vmatpush.bf16.msra.mxu0 %v707
        %1043 = vmatmul.bf16.gmra.mxu0 %v318
        %v1044 = vpop.f32.mrf.mxu0
        %v1045 = vadd.f32 %v996, %v1044
        %v1046 = vpop.f32.mrf.mxu0
        %v1047 = vadd.f32 %v998, %v1046
        %1048 = vmatmul.bf16.gmra.mxu0 %v325
        %v1049 = vpop.f32.mrf.mxu0
        %v1050 = vadd.f32 %v1001, %v1049
        %v1051 = vpop.f32.mrf.mxu0
        %v1052 = vadd.f32 %v1003, %v1051
        %1053 = vmatmul.bf16.gmra.mxu0 %v332
        %v1054 = vpop.f32.mrf.mxu0
        %v1055 = vadd.f32 %v1006, %v1054
        %v1056 = vpop.f32.mrf.mxu0
        %v1057 = vadd.f32 %v1008, %v1056
        %1058 = vmatmul.bf16.gmra.mxu0 %v339
        %v1059 = vpop.f32.mrf.mxu0
        %v1060 = vadd.f32 %v1011, %v1059
        %v1061 = vpop.f32.mrf.mxu0
        %v1062 = vadd.f32 %v1013, %v1061
        %1063 = vmatmul.bf16.gmra.mxu0 %v346
        %v1064 = vpop.f32.mrf.mxu0
        %v1065 = vadd.f32 %v1016, %v1064
        %v1066 = vpop.f32.mrf.mxu0
        %v1067 = vadd.f32 %v1018, %v1066
        %1068 = vmatmul.bf16.gmra.mxu0 %v353
        %v1069 = vpop.f32.mrf.mxu0
        %v1070 = vadd.f32 %v1021, %v1069
        %v1071 = vpop.f32.mrf.mxu0
        %v1072 = vadd.f32 %v1023, %v1071
        %1073 = vmatmul.bf16.gmra.mxu0 %v360
        %v1074 = vpop.f32.mrf.mxu0
        %v1075 = vadd.f32 %v1026, %v1074
        %v1076 = vpop.f32.mrf.mxu0
        %v1077 = vadd.f32 %v1028, %v1076
        %1078 = vmatmul.bf16.gmra.mxu0 %v367
        %v1079 = vpop.f32.mrf.mxu0
        %v1080 = vadd.f32 %v1031, %v1079
        %v1081 = vpop.f32.mrf.mxu0
        %v1082 = vadd.f32 %v1033, %v1081
        %1083 = vdwg.mxu0
        %1084 = vmatpush.bf16.msra.mxu0 0
        %1085 = vmatpush.bf16.msra.mxu0 0
        %1086 = vmatpush.bf16.msra.mxu0 0
        %1087 = vmatpush.bf16.msra.mxu0 0
        %1088 = vmatpush.bf16.msra.mxu0 0
        %1089 = vmatpush.bf16.msra.mxu0 0
        %1090 = vmatpush.bf16.msra.mxu0 0
        %1091 = vmatpush.bf16.msra.mxu0 %v715
        %1092 = vmatmul.bf16.gmra.mxu0 %v767
        %v1093 = vpop.f32.mrf.mxu0
        %v1094 = vadd.f32 %v1045, %v1093
        %v1095 = vpop.f32.mrf.mxu0
        %v1096 = vadd.f32 %v1047, %v1095
        %1097 = vmatmul.bf16.gmra.mxu0 %v770
        %v1098 = vpop.f32.mrf.mxu0
        %v1099 = vadd.f32 %v1050, %v1098
        %v1100 = vpop.f32.mrf.mxu0
        %v1101 = vadd.f32 %v1052, %v1100
        %1102 = vmatmul.bf16.gmra.mxu0 %v773
        %v1103 = vpop.f32.mrf.mxu0
        %v1104 = vadd.f32 %v1055, %v1103
        %v1105 = vpop.f32.mrf.mxu0
        %v1106 = vadd.f32 %v1057, %v1105
        %1107 = vmatmul.bf16.gmra.mxu0 %v776
        %v1108 = vpop.f32.mrf.mxu0
        %v1109 = vadd.f32 %v1060, %v1108
        %v1110 = vpop.f32.mrf.mxu0
        %v1111 = vadd.f32 %v1062, %v1110
        %1112 = vmatmul.bf16.gmra.mxu0 %v779
        %v1113 = vpop.f32.mrf.mxu0
        %v1114 = vadd.f32 %v1065, %v1113
        %v1115 = vpop.f32.mrf.mxu0
        %v1116 = vadd.f32 %v1067, %v1115
        %1117 = vmatmul.bf16.gmra.mxu0 %v782
        %v1118 = vpop.f32.mrf.mxu0
        %v1119 = vadd.f32 %v1070, %v1118
        %v1120 = vpop.f32.mrf.mxu0
        %v1121 = vadd.f32 %v1072, %v1120
        %1122 = vmatmul.bf16.gmra.mxu0 %v785
        %v1123 = vpop.f32.mrf.mxu0
        %v1124 = vadd.f32 %v1075, %v1123
        %v1125 = vpop.f32.mrf.mxu0
        %v1126 = vadd.f32 %v1077, %v1125
        %1127 = vmatmul.bf16.gmra.mxu0 %v788
        %v1128 = vpop.f32.mrf.mxu0
        %v1129 = vadd.f32 %v1080, %v1128
        %v1130 = vpop.f32.mrf.mxu0
        %v1131 = vadd.f32 %v1082, %v1130
        %1132 = vdwg.mxu0
        %1133 = vst [vmem:[%s177] sm:$0xff] %v1094
        %1134 = vst [vmem:[%s177 + $0x8] sm:$0xff] %v1096
        %1135 = vst [vmem:[%s177 + $0x10] sm:$0xff] %v1099
        %1136 = vst [vmem:[%s177 + $0x18] sm:$0xff] %v1101
        %1137 = vst [vmem:[%s177 + $0x20] sm:$0xff] %v1104
        %1138 = vst [vmem:[%s177 + $0x28] sm:$0xff] %v1106
        %1139 = vst [vmem:[%s177 + $0x30] sm:$0xff] %v1109
        %1140 = vst [vmem:[%s177 + $0x38] sm:$0xff] %v1111
        %1141 = vst [vmem:[%s177 + $0x40] sm:$0xff] %v1114
        %1142 = vst [vmem:[%s177 + $0x48] sm:$0xff] %v1116
        %1143 = vst [vmem:[%s177 + $0x50] sm:$0xff] %v1119
        %1144 = vst [vmem:[%s177 + $0x58] sm:$0xff] %v1121
        %1145 = vst [vmem:[%s177 + $0x60] sm:$0xff] %v1124
        %1146 = vst [vmem:[%s177 + $0x68] sm:$0xff] %v1126
        %1147 = vst [vmem:[%s177 + $0x70] sm:$0xff] %v1129
        %1148 = vst [vmem:[%s177 + $0x78] sm:$0xff] %v1131
        %s1149 = sand.u32 %s90, 1
        %s1150 = sand.u32 %s90, 1
        %s1151 = smul.addr %s1150, 128
        %s1152 = scalar_lea.vmem [#allocation2], %s1151
        // Predicated region
        $region33: #{_forward.1} parent=31 // pred_check
          %p1153 = pneg %p100
        $region34: #{_forward.1} parent=31 // pred_check_branch
          %1155 = sbr.rel (%p1153) target = $region36
        $region35: #{_forward.1} parent=31 // pred_region
          %s1156 = smul.u32 16, %s14
          %s1157 = ssub.s32 63, %s1156
          %p1158 = scmp.lt.s32.totalorder %s1157, 16
          %s1159 = scalar_select %p1158, %s1157, 16
          %s1160 = smul.u32 8, %s1159
          %p1161 = scmp.ne.s32.totalorder 0, %s1160
          %s1162 = smul.addr %s1156, 8
          %s1163 = scalar_lea.vmem %s3, %s1162
          // Predicated region
          $region37: #{_forward.1} parent=35 // pred_check
            %p1164 = pneg %p1161
          $region38: #{_forward.1} parent=35 // pred_check_branch
            %1166 = sbr.rel (%p1164) target = $region40
          $region39: #{_forward.1} parent=35 // pred_region
            // Predicated region
            $region41: #{_forward.1} parent=39 // pred_check
              _
            $region42: #{_forward.1} parent=39 // pred_check_branch
              %1168 = sbr.rel (0) target = $region44
            $region43: #{_forward.1} parent=39 // pred_region
              // Predicated region
              $region63: #{_forward.1} parent=43 // pred_check
                _
              $region64: #{_forward.1} parent=43 // pred_check_branch
                %1248 = sbr.rel (0) target = $region66
              $region65: #{_forward.1} parent=43 // pred_region
                %s1249 = sshrl.u32 %s1159, 4
                // While loop
                $region67: #{_forward.1} parent=65 // loop_pre_header
                  _
                $region68: #{_forward.1} parent=65 // loop_header
                  %s1251 = sphi 0, %s1253
                  %p1252 = scmp.ge.s32.totalorder %s1251, %s1249
                  %s1256 = sphi 0, %s1293
                  %s1257 = sphi %s1152, %s1296
                  %s1258 = sphi %s1163, %s1297
                $region69: #{_forward.1} parent=65 // loop_header_branch
                  %1255 = sbr.rel (%p1252) target = $region73
                $region70: #{_forward.1} parent=65 // loop_body
                  %v1259 = vld [vmem:[%s1257] sm:$0xff]
                  %1260 = vst [vmem:[%s1258] sm:$0xff] %v1259
                  %v1261 = vld [vmem:[%s1257 + $0x8] sm:$0xff]
                  %1262 = vst [vmem:[%s1258 + $0x8] sm:$0xff] %v1261
                  %v1263 = vld [vmem:[%s1257 + $0x10] sm:$0xff]
                  %1264 = vst [vmem:[%s1258 + $0x10] sm:$0xff] %v1263
                  %v1265 = vld [vmem:[%s1257 + $0x18] sm:$0xff]
                  %1266 = vst [vmem:[%s1258 + $0x18] sm:$0xff] %v1265
                  %v1267 = vld [vmem:[%s1257 + $0x20] sm:$0xff]
                  %1268 = vst [vmem:[%s1258 + $0x20] sm:$0xff] %v1267
                  %v1269 = vld [vmem:[%s1257 + $0x28] sm:$0xff]
                  %1270 = vst [vmem:[%s1258 + $0x28] sm:$0xff] %v1269
                  %v1271 = vld [vmem:[%s1257 + $0x30] sm:$0xff]
                  %1272 = vst [vmem:[%s1258 + $0x30] sm:$0xff] %v1271
                  %v1273 = vld [vmem:[%s1257 + $0x38] sm:$0xff]
                  %1274 = vst [vmem:[%s1258 + $0x38] sm:$0xff] %v1273
                  %v1275 = vld [vmem:[%s1257 + $0x40] sm:$0xff]
                  %1276 = vst [vmem:[%s1258 + $0x40] sm:$0xff] %v1275
                  %v1277 = vld [vmem:[%s1257 + $0x48] sm:$0xff]
                  %1278 = vst [vmem:[%s1258 + $0x48] sm:$0xff] %v1277
                  %v1279 = vld [vmem:[%s1257 + $0x50] sm:$0xff]
                  %1280 = vst [vmem:[%s1258 + $0x50] sm:$0xff] %v1279
                  %v1281 = vld [vmem:[%s1257 + $0x58] sm:$0xff]
                  %1282 = vst [vmem:[%s1258 + $0x58] sm:$0xff] %v1281
                  %v1283 = vld [vmem:[%s1257 + $0x60] sm:$0xff]
                  %1284 = vst [vmem:[%s1258 + $0x60] sm:$0xff] %v1283
                  %v1285 = vld [vmem:[%s1257 + $0x68] sm:$0xff]
                  %1286 = vst [vmem:[%s1258 + $0x68] sm:$0xff] %v1285
                  %v1287 = vld [vmem:[%s1257 + $0x70] sm:$0xff]
                  %1288 = vst [vmem:[%s1258 + $0x70] sm:$0xff] %v1287
                  %v1289 = vld [vmem:[%s1257 + $0x78] sm:$0xff]
                  %1290 = vst [vmem:[%s1258 + $0x78] sm:$0xff] %v1289
                  %s1291 = sadd.s32 1, %s1256
                  %p1292 = scmp.ge.s32.totalorder %s1291, %s1249
                  %s1293 = scalar_select %p1292, 0, %s1291
                  %s1294 = smul.u32 %s1293, 128
                  %s1295 = smul.u32 %s1293, 128
                  %s1296 = scalar_lea.vmem %s1152, %s1294 [#allocation2]
                  %s1297 = scalar_lea.vmem %s1163, %s1295
                $region71: #{_forward.1} parent=65 // loop_footer
                  %s1253 = sadd.s32 %s1251, 1
                $region72: #{_forward.1} parent=65 // loop_footer_branch
                  %1250 = sbr.rel target = $region68
                $region73: #{_forward.1} parent=65 // loop_exit
                  _
                %s1298 = sshrl.u32 %s1159, 4
                %s1299 = sand.u32 %s1159, 15
                %s1300 = smul.u32 %s1298, 16
                %s1301 = smul.u32 8, %s1300
                %s1302 = scalar_lea.vmem %s1152, %s1301 [#allocation2]
                %s1303 = smul.u32 8, %s1300
                %s1304 = scalar_lea.vmem %s1163, %s1303
                // While loop
                $region74: #{_forward.1} parent=65 // loop_pre_header
                  _
                $region75: #{_forward.1} parent=65 // loop_header
                  %s1306 = sphi 0, %s1308
                  %p1307 = scmp.ge.s32.totalorder %s1306, %s1299
                  %s1311 = sphi 0, %s1318
                  %s1312 = sphi %s1302, %s1321
                  %s1313 = sphi %s1304, %s1322
                $region76: #{_forward.1} parent=65 // loop_header_branch
                  %1310 = sbr.rel (%p1307) target = $region80
                $region77: #{_forward.1} parent=65 // loop_body
                  %v1314 = vld [vmem:[%s1312] sm:$0xff]
                  %1315 = vst [vmem:[%s1313] sm:$0xff] %v1314
                  %s1316 = sadd.s32 1, %s1311
                  %p1317 = scmp.ge.s32.totalorder %s1316, %s1299
                  %s1318 = scalar_select %p1317, 0, %s1316
                  %s1319 = smul.u32 %s1318, 8
                  %s1320 = smul.u32 %s1318, 8
                  %s1321 = scalar_lea.vmem %s1302, %s1319 [#allocation2]
                  %s1322 = scalar_lea.vmem %s1304, %s1320
                $region78: #{_forward.1} parent=65 // loop_footer
                  %s1308 = sadd.s32 %s1306, 1
                $region79: #{_forward.1} parent=65 // loop_footer_branch
                  %1305 = sbr.rel target = $region75
                $region80: #{_forward.1} parent=65 // loop_exit
                  _
              $region66: #{_forward.1} parent=43 // pred_fallthru
                _
              // Predicated region
              $region81: #{_forward.1} parent=43 // pred_check
                _
              $region82: #{_forward.1} parent=43 // pred_check_branch
                %1324 = sbr.rel target = $region84
              $region83: #{_forward.1} parent=43 // pred_region
                _
              $region84: #{_forward.1} parent=43 // pred_fallthru
                _
            $region44: #{_forward.1} parent=39 // pred_fallthru
              _
            // Predicated region
            $region45: #{_forward.1} parent=39 // pred_check
              _
            $region46: #{_forward.1} parent=39 // pred_check_branch
              %1170 = sbr.rel target = $region48
            $region47: #{_forward.1} parent=39 // pred_region
              %s1172 = ssub.s32 256, 1
              %s1173 = sshrl.u32 %s1159, 4
              // While loop
              $region49: #{_forward.1} parent=47 // loop_pre_header
                _
              $region50: #{_forward.1} parent=47 // loop_header
                %s1175 = sphi 0, %s1177
                %p1176 = scmp.ge.s32.totalorder %s1175, %s1173
                %s1180 = sphi 0, %s1217
                %s1181 = sphi %s1152, %s1220
                %s1182 = sphi %s1163, %s1221
              $region51: #{_forward.1} parent=47 // loop_header_branch
                %1179 = sbr.rel (%p1176) target = $region55
              $region52: #{_forward.1} parent=47 // loop_body
                %v1183 = vld [vmem:[%s1181] sm:%s1172]
                %1184 = vst [vmem:[%s1182] sm:%s1172] %v1183
                %v1185 = vld [vmem:[%s1181 + $0x8] sm:%s1172]
                %1186 = vst [vmem:[%s1182 + $0x8] sm:%s1172] %v1185
                %v1187 = vld [vmem:[%s1181 + $0x10] sm:%s1172]
                %1188 = vst [vmem:[%s1182 + $0x10] sm:%s1172] %v1187
                %v1189 = vld [vmem:[%s1181 + $0x18] sm:%s1172]
                %1190 = vst [vmem:[%s1182 + $0x18] sm:%s1172] %v1189
                %v1191 = vld [vmem:[%s1181 + $0x20] sm:%s1172]
                %1192 = vst [vmem:[%s1182 + $0x20] sm:%s1172] %v1191
                %v1193 = vld [vmem:[%s1181 + $0x28] sm:%s1172]
                %1194 = vst [vmem:[%s1182 + $0x28] sm:%s1172] %v1193
                %v1195 = vld [vmem:[%s1181 + $0x30] sm:%s1172]
                %1196 = vst [vmem:[%s1182 + $0x30] sm:%s1172] %v1195
                %v1197 = vld [vmem:[%s1181 + $0x38] sm:%s1172]
                %1198 = vst [vmem:[%s1182 + $0x38] sm:%s1172] %v1197
                %v1199 = vld [vmem:[%s1181 + $0x40] sm:%s1172]
                %1200 = vst [vmem:[%s1182 + $0x40] sm:%s1172] %v1199
                %v1201 = vld [vmem:[%s1181 + $0x48] sm:%s1172]
                %1202 = vst [vmem:[%s1182 + $0x48] sm:%s1172] %v1201
                %v1203 = vld [vmem:[%s1181 + $0x50] sm:%s1172]
                %1204 = vst [vmem:[%s1182 + $0x50] sm:%s1172] %v1203
                %v1205 = vld [vmem:[%s1181 + $0x58] sm:%s1172]
                %1206 = vst [vmem:[%s1182 + $0x58] sm:%s1172] %v1205
                %v1207 = vld [vmem:[%s1181 + $0x60] sm:%s1172]
                %1208 = vst [vmem:[%s1182 + $0x60] sm:%s1172] %v1207
                %v1209 = vld [vmem:[%s1181 + $0x68] sm:%s1172]
                %1210 = vst [vmem:[%s1182 + $0x68] sm:%s1172] %v1209
                %v1211 = vld [vmem:[%s1181 + $0x70] sm:%s1172]
                %1212 = vst [vmem:[%s1182 + $0x70] sm:%s1172] %v1211
                %v1213 = vld [vmem:[%s1181 + $0x78] sm:%s1172]
                %1214 = vst [vmem:[%s1182 + $0x78] sm:%s1172] %v1213
                %s1215 = sadd.s32 1, %s1180
                %p1216 = scmp.ge.s32.totalorder %s1215, %s1173
                %s1217 = scalar_select %p1216, 0, %s1215
                %s1218 = smul.u32 %s1217, 128
                %s1219 = smul.u32 %s1217, 128
                %s1220 = scalar_lea.vmem %s1152, %s1218 [#allocation2]
                %s1221 = scalar_lea.vmem %s1163, %s1219
              $region53: #{_forward.1} parent=47 // loop_footer
                %s1177 = sadd.s32 %s1175, 1
              $region54: #{_forward.1} parent=47 // loop_footer_branch
                %1174 = sbr.rel target = $region50
              $region55: #{_forward.1} parent=47 // loop_exit
                _
              %s1222 = sshrl.u32 %s1159, 4
              %s1223 = sand.u32 %s1159, 15
              %s1224 = smul.u32 %s1222, 16
              %s1225 = smul.u32 8, %s1224
              %s1226 = scalar_lea.vmem %s1152, %s1225 [#allocation2]
              %s1227 = smul.u32 8, %s1224
              %s1228 = scalar_lea.vmem %s1163, %s1227
              // While loop
              $region56: #{_forward.1} parent=47 // loop_pre_header
                _
              $region57: #{_forward.1} parent=47 // loop_header
                %s1230 = sphi 0, %s1232
                %p1231 = scmp.ge.s32.totalorder %s1230, %s1223
                %s1235 = sphi 0, %s1242
                %s1236 = sphi %s1226, %s1245
                %s1237 = sphi %s1228, %s1246
              $region58: #{_forward.1} parent=47 // loop_header_branch
                %1234 = sbr.rel (%p1231) target = $region62
              $region59: #{_forward.1} parent=47 // loop_body
                %v1238 = vld [vmem:[%s1236] sm:%s1172]
                %1239 = vst [vmem:[%s1237] sm:%s1172] %v1238
                %s1240 = sadd.s32 1, %s1235
                %p1241 = scmp.ge.s32.totalorder %s1240, %s1223
                %s1242 = scalar_select %p1241, 0, %s1240
                %s1243 = smul.u32 %s1242, 8
                %s1244 = smul.u32 %s1242, 8
                %s1245 = scalar_lea.vmem %s1226, %s1243 [#allocation2]
                %s1246 = scalar_lea.vmem %s1228, %s1244
              $region60: #{_forward.1} parent=47 // loop_footer
                %s1232 = sadd.s32 %s1230, 1
              $region61: #{_forward.1} parent=47 // loop_footer_branch
                %1229 = sbr.rel target = $region57
              $region62: #{_forward.1} parent=47 // loop_exit
                _
            $region48: #{_forward.1} parent=39 // pred_fallthru
              _
          $region40: #{_forward.1} parent=35 // pred_fallthru
            _
          %1325 = vnop
        $region36: #{_forward.1} parent=31 // pred_fallthru
          _
      $region32: #{_forward.1} parent=5 // pred_fallthru
        _
      %p1326 = scmp.le.s32.totalorder 2, %s9
      // Predicated region
      $region85: #{_forward.1} parent=5 // pred_check
        %p1327 = pneg %p1326
      $region86: #{_forward.1} parent=5 // pred_check_branch
        %1329 = sbr.rel (%p1327) target = $region88
      $region87: #{_forward.1} parent=5 // pred_region
        %s1330 = ssub.s32 %s9, 2
        // Predicated region
        $region89: #{_forward.1} parent=87 // pred_check
          %p1331 = pneg %p106
        $region90: #{_forward.1} parent=87 // pred_check_branch
          %1333 = sbr.rel (%p1331) target = $region92
        $region91: #{_forward.1} parent=87 // pred_region
          %s1334 = sand.u32 %s91, 1
          %s1335 = sand.u32 %s91, 1
          %s1336 = smul.addr %s1335, 128
          %s1337 = scalar_lea.vmem [#allocation2], %s1336
        $region92: #{_forward.1} parent=87 // pred_fallthru
          _
      $region88: #{_forward.1} parent=5 // pred_fallthru
        _
    $region6: #{_forward.1} parent=1 // loop_footer
      %s13 = sadd.s32 1, %s9
    $region7: #{_forward.1} parent=1 // loop_footer_branch
      %8 = sbr.rel target = $region3
    $region8: #{_forward.1} parent=1 // loop_exit
      _

</llo_original>
